<compile_context>
chip_gen: v6e
topology: v6e:2x2x1
jax: 0.10.0
libtpu: 0.0.40
codegen_flags: <defaults>
</compile_context>

<pallas_src>
import functools

import jax
import jax.numpy as jnp
from jax.experimental import pallas as pl
from jax.experimental.pallas import tpu as pltpu

_TARGET_TILE_BYTES = 8 << 20               # per-buffer tile budget (~8 MiB)
_LANE_CANDIDATES = (8192, 4096, 2048, 1024, 512, 256, 128)


def _cdiv(a, b):
    return -(-a // b)


def _round_up(a, b):
    return _cdiv(a, b) * b


def _round_down(a, b):
    return (a // b) * b


def _view_2d(x):
    """Free (copy-less) 2-D view of x; never pads."""
    n = x.size
    # Prefer a lane-dense flat slab (last dim a big multiple of 128).
    for lane in _LANE_CANDIDATES:
        if n % lane == 0:
            return x.reshape(n // lane, lane)
    # Otherwise use the natural 2-D view; block width == full trailing dim is
    # always a legal block shape (stores on the ragged lane tail are masked).
    if x.ndim >= 2:
        return x.reshape(-1, x.shape[-1])
    return x.reshape(1, n)


def _plan(rows, cols, itemsize):
    """Pick (block_rows, block_cols) <= ~_TARGET_TILE_BYTES, clamped to the array."""
    sub = max(8, 32 // itemsize)           # sublane pack: f32->8, bf16->16, int8->32
    # Column blocking: take the full trailing dim when a sub-row strip of it
    # fits the budget; otherwise a multiple-of-128 chunk (grid over-covers tail).
    max_cols = max(128, _round_down(_TARGET_TILE_BYTES // (sub * itemsize), 128))
    block_cols = cols if cols <= max_cols else max_cols
    # Row blocking: fill the tile budget, but never blow up past the array.
    budget_rows = max(sub, _TARGET_TILE_BYTES // (block_cols * itemsize))
    if rows < sub:
        block_rows = rows                  # equals the full dim -> always legal
    else:
        block_rows = min(max(sub, _round_down(budget_rows, sub)),
                         _round_up(rows, sub))
    return block_rows, block_cols


def _gain_clip_kernel(amp_ref, x_ref, o_ref):
    # amp_ref: (1, 1) float32 scalar in SMEM.
    # x_ref / o_ref: (block_rows, block_cols) VMEM tiles at the native dtype.
    amp = amp_ref[0, 0]
    y = x_ref[...].astype(jnp.float32) * amp          # upcast + gain in-register
    # Exactly torch's x[x>1]=1; x[x<-1]=-1 (NaN untouched).
    y = jnp.where(y > 1.0, 1.0, jnp.where(y < -1.0, -1.0, y))
    o_ref[...] = y.astype(o_ref.dtype)


@functools.partial(jax.jit, static_argnames=("low", "high", "min_pallas_bytes"))
def random_gain(x, key, low=-20, high=6, *, min_pallas_bytes=1 << 20):
    """RandomGain.forward(x): random integer dB gain in [low, high), clip to [-1, 1]."""
    if not jnp.issubdtype(x.dtype, jnp.floating):
        raise TypeError(f"random_gain expects a floating dtype, got {x.dtype}")

    gain_db = jax.random.randint(key, (1,), low, high, dtype=jnp.int32)  # [low, high)
    amp = jnp.power(10.0, gain_db.astype(jnp.float32) / 20.0)            # db_to_amp

    orig_shape = x.shape
    orig_dtype = x.dtype
    itemsize = jnp.dtype(orig_dtype).itemsize

    # Tiny inputs are launch-latency bound: one fused XLA elementwise op beats
    # the pallas_call fixed cost there.
    if x.size * itemsize < min_pallas_bytes:
        y = x.astype(jnp.float32) * amp[0]
        y = jnp.where(y > 1.0, 1.0, jnp.where(y < -1.0, -1.0, y))
        return y.astype(orig_dtype)

    x2d = _view_2d(x)                       # free reshape, never pads
    rows, cols = x2d.shape
    block_rows, block_cols = _plan(rows, cols, itemsize)
    grid = (_cdiv(rows, block_rows), _cdiv(cols, block_cols))

    # 2x double-buffered (in + out) tiles + headroom; <=48 MiB (safe on v7x's
    # 64 MiB physical VMEM, trivially safe on v5e/v6e's 128 MiB).
    tile_bytes = block_rows * block_cols * itemsize
    vmem_limit = int(min(48 << 20, max(32 << 20, 5 * tile_bytes)))

    out = pl.pallas_call(
        _gain_clip_kernel,
        out_shape=jax.ShapeDtypeStruct((rows, cols), orig_dtype),
        grid=grid,
        in_specs=[
            pl.BlockSpec(memory_space=pltpu.MemorySpace.SMEM),        # amp (1,1)
            pl.BlockSpec((block_rows, block_cols), lambda i, j: (i, j)),
        ],
        out_specs=pl.BlockSpec((block_rows, block_cols), lambda i, j: (i, j)),
        compiler_params=pltpu.CompilerParams(
            dimension_semantics=("parallel", "parallel"),
            vmem_limit_bytes=vmem_limit,
        ),
        # TODO(synk): add input_output_aliases={1: 0} when the caller donates x
        # (halves peak HBM allocation; no effect on HBM traffic).
    )(amp.reshape(1, 1), x2d)

    return out.reshape(orig_shape)


if __name__ == "__main__":
    key = jax.random.PRNGKey(0)
    k_x, k_gain = jax.random.split(key)

    low, high = -20, 6
    gain_db = jax.random.randint(k_gain, (1,), low, high, dtype=jnp.int32)
    amp = jnp.power(10.0, gain_db.astype(jnp.float32) / 20.0)[0]

    # 1) Small audio-like input (batch=2, channels=4, samples=1024), Pallas path forced.
    x = jax.random.normal(k_x, (2, 4, 1024), dtype=jnp.float32)
    y = jax.block_until_ready(random_gain(x, k_gain, low=low, high=high, min_pallas_bytes=0))
    xg = x * amp
    ref = jnp.where(xg > 1.0, 1.0, jnp.where(xg < -1.0, -1.0, xg))
    assert y.shape == x.shape and y.dtype == x.dtype
    assert jnp.allclose(y, ref, atol=1e-6), "f32 mismatch vs reference"

    # 2) bf16 with an odd, non-128-divisible size: exercises the natural-view /
    #    masked-tail path (no padding, no trailing slice).
    xb = jax.random.normal(k_x, (1, 3, 777), dtype=jnp.bfloat16)
    yb = jax.block_until_ready(random_gain(xb, k_gain, low=low, high=high, min_pallas_bytes=0))
    refb = jnp.clip(xb.astype(jnp.float32) * amp, -1.0, 1.0).astype(jnp.bfloat16)
    assert yb.shape == xb.shape and yb.dtype == xb.dtype
    assert jnp.allclose(yb.astype(jnp.float32), refb.astype(jnp.float32), atol=1e-2), \
        "bf16 mismatch vs reference"

    # 3) Default dispatch: tiny inputs take the fused pure-JAX path (same result).
    y_small = jax.block_until_ready(random_gain(x, k_gain, low=low, high=high))
    assert jnp.allclose(y_small, ref, atol=1e-6), "fallback path mismatch"

    print("KERNEL_OK")
</pallas_src>

<mosaic_0001>
module attributes {stable_mosaic.version = 11 : i64} {
  func.func @_gain_clip_kernel(%arg0: i32, %arg1: i32, %arg2: memref<1x1xf32, #tpu.memory_space<smem>>, %arg3: memref<1x8192xf32, #tpu.memory_space<vmem>>, %arg4: memref<1x8192xf32, #tpu.memory_space<vmem>>) attributes {dimension_semantics = [#tpu.dimension_semantics<parallel>, #tpu.dimension_semantics<parallel>], iteration_bounds = array<i64: 1, 1>, scalar_prefetch = 0 : i64, scratch_operands = 0 : i64, tpu.core_type = #tpu.core_type<tc>, window_params = [{transform_indices = @transform_0, window_bounds = array<i64: 1, 1>}, {transform_indices = @transform_1, window_bounds = array<i64: 1, 8192>}, {transform_indices = @transform_2, window_bounds = array<i64: 1, 8192>}]} {
    %c0 = arith.constant 0 : index
    %c0_0 = arith.constant 0 : index
    %0 = memref.load %arg2[%c0, %c0_0] : memref<1x1xf32, #tpu.memory_space<smem>>
    %c0_1 = arith.constant 0 : index
    %c0_2 = arith.constant 0 : index
    %1 = vector.load %arg3[%c0_1, %c0_2] : memref<1x8192xf32, #tpu.memory_space<vmem>>, vector<1x8192xf32>
    %2 = vector.broadcast %0 : f32 to vector<1x8192xf32>
    %3 = arith.mulf %1, %2 : vector<1x8192xf32>
    %cst = arith.constant 1.000000e+00 : f32
    %4 = vector.broadcast %cst : f32 to vector<1x8192xf32>
    %5 = arith.cmpf ogt, %3, %4 : vector<1x8192xf32>
    %cst_3 = arith.constant -1.000000e+00 : f32
    %6 = vector.broadcast %cst_3 : f32 to vector<1x8192xf32>
    %7 = arith.cmpf olt, %3, %6 : vector<1x8192xf32>
    %cst_4 = arith.constant -1.000000e+00 : f32
    %8 = vector.broadcast %cst_4 : f32 to vector<1x8192xf32>
    %9 = arith.select %7, %8, %3 : vector<1x8192xi1>, vector<1x8192xf32>
    %cst_5 = arith.constant 1.000000e+00 : f32
    %10 = vector.broadcast %cst_5 : f32 to vector<1x8192xf32>
    %11 = arith.select %5, %10, %9 : vector<1x8192xi1>, vector<1x8192xf32>
    %c0_6 = arith.constant 0 : index
    %c0_7 = arith.constant 0 : index
    %12 = vector.load %arg4[%c0_6, %c0_7] : memref<1x8192xf32, #tpu.memory_space<vmem>>, vector<1x8192xf32>
    tpu.vector_store %arg4[%c0_6, %c0_7], %11 {strides = array<i32>} : memref<1x8192xf32, #tpu.memory_space<vmem>>, vector<1x8192xf32>,
    return
  }
  func.func @transform_0(%arg0: i32, %arg1: i32) -> (i32, i32) {
    %c0_i32 = arith.constant 0 : i32
    %c0_i32_0 = arith.constant 0 : i32
    %c0_i32_1 = arith.constant 0 : i32
    return %c0_i32, %c0_i32_0 : i32, i32
  }
  func.func @transform_1(%arg0: i32, %arg1: i32) -> (i32, i32) {
    %c0_i32 = arith.constant 0 : i32
    return %arg0, %arg1 : i32, i32
  }
  func.func @transform_2(%arg0: i32, %arg1: i32) -> (i32, i32) {
    %c0_i32 = arith.constant 0 : i32
    return %arg0, %arg1 : i32, i32
  }
}

</mosaic_0001>

<llo_original>
// kernel: random_gain.1
$region0: #{random_gain.1}
  #allocation0 [shape = 'u32[]', space=smem, size = 0x4, offset = 0x4, fixed_abs, tag = 'smem constant byte address 0x4 - core index']
  #allocation1 [shape = 'u32[144,128]{1,0:T(1,128)}', space=vmem, size = 0x12000, scoped, tag = 'internal scratch']
  #allocation2 [shape = 'f32[1,1]{1,0:T(1,128)S(6)}', space=smem, size = 0x200, scoped, tag = 'scoped memory for random_gain.1']
  %s0 = inlined_call_operand.<no memory space> [shape: f32[1,1], index: 0, kind: input, shape index: {}]
  %s1 = inlined_call_operand.vmem [shape: f32[1,8192], index: 1, kind: input, shape index: {}]
  %s2 = inlined_call_operand.vmem [shape: f32[1,8192], index: 2, kind: output, shape index: {}]
  %s3 = sld [smem:[#allocation0]]
  $region18: #{random_gain.1} parent=0
    _
  %s5 = ssub.s32 1, %s3
  %s6 = scalar_select 0, %s5, %s3
  %7 = sst [smem:[#allocation2]] %s0
  // Predicated region
  $region2: #{random_gain.1} parent=0 // pred_check
    _
  $region3: #{random_gain.1} parent=0 // pred_check_branch
    %9 = sbr.rel (0) target = $region5
  $region4: #{random_gain.1} parent=0 // pred_region
    _
  $region5: #{random_gain.1} parent=0 // pred_fallthru
    _
  // Predicated region
  $region6: #{random_gain.1} parent=0 // pred_check
    _
  $region7: #{random_gain.1} parent=0 // pred_check_branch
    %11 = sbr.rel (0) target = $region9
  $region8: #{random_gain.1} parent=0 // pred_region
    _
  $region9: #{random_gain.1} parent=0 // pred_fallthru
    _
  %s12 = sld [smem:[#allocation2]]
  %v13 = vld [vmem:[%s1] sm:$0xff]
  %v14 = vld [vmem:[%s1 + $0x8] sm:$0xff]
  %v15 = vld [vmem:[%s1 + $0x10] sm:$0xff]
  %v16 = vld [vmem:[%s1 + $0x18] sm:$0xff]
  %v17 = vld [vmem:[%s1 + $0x20] sm:$0xff]
  %v18 = vld [vmem:[%s1 + $0x28] sm:$0xff]
  %v19 = vld [vmem:[%s1 + $0x30] sm:$0xff]
  %v20 = vld [vmem:[%s1 + $0x38] sm:$0xff]
  %v21 = vstv %s12
  %v22 = vmul.f32 %v13, %v21
  %v23 = vmul.f32 %v14, %v21
  %v24 = vmul.f32 %v15, %v21
  %v25 = vmul.f32 %v16, %v21
  %v26 = vmul.f32 %v17, %v21
  %v27 = vmul.f32 %v18, %v21
  %v28 = vmul.f32 %v19, %v21
  %v29 = vmul.f32 %v20, %v21
  %vm30 = vcmp.gt.f32.partialorder %v22, 1.0
  %vm31 = vcmp.gt.f32.partialorder %v23, 1.0
  %vm32 = vcmp.gt.f32.partialorder %v24, 1.0
  %vm33 = vcmp.gt.f32.partialorder %v25, 1.0
  %vm34 = vcmp.gt.f32.partialorder %v26, 1.0
  %vm35 = vcmp.gt.f32.partialorder %v27, 1.0
  %vm36 = vcmp.gt.f32.partialorder %v28, 1.0
  %vm37 = vcmp.gt.f32.partialorder %v29, 1.0
  %vm38 = vcmp.lt.f32.partialorder %v22, -1.0
  %vm39 = vcmp.lt.f32.partialorder %v23, -1.0
  %vm40 = vcmp.lt.f32.partialorder %v24, -1.0
  %vm41 = vcmp.lt.f32.partialorder %v25, -1.0
  %vm42 = vcmp.lt.f32.partialorder %v26, -1.0
  %vm43 = vcmp.lt.f32.partialorder %v27, -1.0
  %vm44 = vcmp.lt.f32.partialorder %v28, -1.0
  %vm45 = vcmp.lt.f32.partialorder %v29, -1.0
  %v46 = vsel %vm38, -1.0, %v22
  %v47 = vsel %vm39, -1.0, %v23
  %v48 = vsel %vm40, -1.0, %v24
  %v49 = vsel %vm41, -1.0, %v25
  %v50 = vsel %vm42, -1.0, %v26
  %v51 = vsel %vm43, -1.0, %v27
  %v52 = vsel %vm44, -1.0, %v28
  %v53 = vsel %vm45, -1.0, %v29
  %v54 = vsel %vm30, 1.0, %v46
  %v55 = vsel %vm31, 1.0, %v47
  %v56 = vsel %vm32, 1.0, %v48
  %v57 = vsel %vm33, 1.0, %v49
  %v58 = vsel %vm34, 1.0, %v50
  %v59 = vsel %vm35, 1.0, %v51
  %v60 = vsel %vm36, 1.0, %v52
  %v61 = vsel %vm37, 1.0, %v53
  %62 = vst [vmem:[%s2] sm:$0xff] %v54
  %63 = vst [vmem:[%s2 + $0x8] sm:$0xff] %v55
  %64 = vst [vmem:[%s2 + $0x10] sm:$0xff] %v56
  %65 = vst [vmem:[%s2 + $0x18] sm:$0xff] %v57
  %66 = vst [vmem:[%s2 + $0x20] sm:$0xff] %v58
  %67 = vst [vmem:[%s2 + $0x28] sm:$0xff] %v59
  %68 = vst [vmem:[%s2 + $0x30] sm:$0xff] %v60
  %69 = vst [vmem:[%s2 + $0x38] sm:$0xff] %v61
  // Predicated region
  $region10: #{random_gain.1} parent=0 // pred_check
    _
  $region11: #{random_gain.1} parent=0 // pred_check_branch
    %71 = sbr.rel (0) target = $region13
  $region12: #{random_gain.1} parent=0 // pred_region
    _
  $region13: #{random_gain.1} parent=0 // pred_fallthru
    _
  // Predicated region
  $region14: #{random_gain.1} parent=0 // pred_check
    _
  $region15: #{random_gain.1} parent=0 // pred_check_branch
    %73 = sbr.rel (0) target = $region17
  $region16: #{random_gain.1} parent=0 // pred_region
    _
  $region17: #{random_gain.1} parent=0 // pred_fallthru
    _

</llo_original>
